<compile_context>
chip_gen: v5e
topology: v5e:2x2
jax: 0.10.0
libtpu: 0.0.40
codegen_flags: <defaults>
</compile_context>

<pallas_src>
import functools
import math

import jax
import jax.numpy as jnp
from jax.experimental import pallas as pl
from jax.experimental.pallas import tpu as pltpu

_MIB = 1024 * 1024
_SQRT_HALF = 1.0 / math.sqrt(2.0)


def _apply_activation(y, activation):
    if activation == "relu":
        return jnp.maximum(y, 0.0)
    if activation == "gelu":
        # x * 0.5 * (1 + erf(x / sqrt(2)))  (matches the module's gelu)
        return y * 0.5 * (1.0 + jax.lax.erf(y * _SQRT_HALF))
    if activation == "swish":
        return y * jax.nn.sigmoid(y)
    raise ValueError(f"unsupported activation: {activation}")


# ---------------------------------------------------------------------------
# Kernels
# ---------------------------------------------------------------------------
def _linear_act_kernel(x_ref, wt_ref, b_ref, o_ref, *, activation):
    """Collapsed-K variant: full reduction per grid step, no scratch, no branches."""
    # x_ref: (TM, K)   wt_ref: (K, TN)   b_ref: (1, TN)   o_ref: (TM, TN)
    y = jnp.dot(x_ref[...], wt_ref[...], preferred_element_type=jnp.float32)
    y = y + b_ref[...].astype(jnp.float32)
    o_ref[...] = _apply_activation(y, activation).astype(o_ref.dtype)


def _linear_act_acc_kernel(x_ref, wt_ref, b_ref, o_ref, acc_ref, *, activation):
    """K-tiled variant: f32 VMEM accumulator, bias + activation in the last K step."""
    k = pl.program_id(2)
    part = jnp.dot(x_ref[...], wt_ref[...], preferred_element_type=jnp.float32)

    @pl.when(k == 0)
    def _first():
        acc_ref[...] = part            # direct assign: saves the zero-init pass

    @pl.when(k > 0)
    def _accumulate():
        acc_ref[...] += part

    @pl.when(k == pl.num_programs(2) - 1)
    def _finalize():
        y = acc_ref[...] + b_ref[...].astype(jnp.float32)
        o_ref[...] = _apply_activation(y, activation).astype(o_ref.dtype)


# ---------------------------------------------------------------------------
# Tile selection / VMEM budgeting
# ---------------------------------------------------------------------------
def _round_down(v, m):
    return max(m, (v // m) * m)


def _vmem_budget_bytes():
    """Per-TensorCore VMEM budget with headroom for Mosaic internal scratch."""
    phys = 64 * _MIB                      # conservative fallback (v7x per-TC VMEM)
    try:
        phys = int(getattr(pltpu.get_tpu_info(), "vmem_capacity_bytes", phys))
    except Exception:
        pass
    # v7x (64 MiB physical) -> 48 MiB budget; v5e/v6e (128 MiB) -> 110 MiB.
    return max(32 * _MIB, min(phys - 16 * _MIB, 110 * _MIB))


def _vmem_cost(tm, tn, tk, K, in_bytes, out_bytes, w_bufs):
    cost = 2 * tm * tk * in_bytes          # x blocks (double-buffered)
    cost += w_bufs * tk * tn * in_bytes    # W^T blocks
    cost += 2 * tn * 4                     # bias blocks
    cost += 2 * tm * tn * out_bytes        # output blocks
    if tk != K:
        cost += tm * tn * 4                # f32 accumulator scratch
    return cost


def _select_tiles(M, N, K, in_bytes, out_bytes, budget):
    """Pick (tile_m, tile_n, tile_k, weight_buffers).

    Preference order (highest value first, per the perf review):
      1. collapse K (tile_k == K)        -> no accumulator traffic / epilogue
      2. weight residency (tile_n == N)  -> weight read from HBM exactly once
      3. the largest row tile that fits  -> fewer ~0.35 us grid steps
    """
    m_cands = [M] if M <= 512 else [512, 256, 128]
    n_cands = [N] if N <= 512 else [N] + [v for v in (512, 256, 128) if v < N]
    k_cands = [K] + [v for v in (2048, 1536, 1024, 512, 256, 128)
                     if v < K and K % v == 0]

    for tk in k_cands:
        for tn in n_cands:
            resident = (tk == K and tn == N)
            for tm in m_cands:
                for w_bufs in ((2, 1) if resident else (2,)):
                    if _vmem_cost(tm, tn, tk, K, in_bytes, out_bytes, w_bufs) <= budget:
                        return tm, tn, tk, w_bufs
    # Nothing fit the budget (pathological shapes): smallest candidates.
    return m_cands[-1], n_cands[-1], k_cands[-1], 2


def _weight_block_spec(block_shape, index_map, buffer_count):
    """BlockSpec for W^T; non-default buffer counts via pipeline_mode=pl.Buffered."""
    if buffer_count != 2 and hasattr(pl, "Buffered"):
        try:
            return pl.BlockSpec(block_shape, index_map,
                                pipeline_mode=pl.Buffered(buffer_count))
        except TypeError:   # BlockSpec without pipeline_mode support
            pass
    return pl.BlockSpec(block_shape, index_map)


# ---------------------------------------------------------------------------
# Wrapper
# ---------------------------------------------------------------------------
def com_intermediate(x, weight, bias, *, activation="relu",
                     tile_m=None, tile_n=None, tile_k=None,
                     compute_dtype=None, weight_buffers=None):
    """Pallas implementation of ComIntermediate.forward: activation(x @ W^T + b).

    x:      (..., d_model)
    weight: (d_model, d_model)   nn.Linear weight, (out_features, in_features)
    bias:   (d_model,)
    compute_dtype: dtype of the MXU operands. None (default) preserves x's
        dtype so numerics match the f32 PyTorch module exactly.
        jnp.bfloat16 is the RECOMMENDED mode for f32 inputs on TPU (v5e/v6e/v7x
        bf16 MXU rate + half the HBM bytes); accumulation and the bias /
        activation epilogue stay in f32 and the output keeps x's dtype.
    weight_buffers: optional override of the weight pipeline depth (e.g. 3 to
        deepen prefetch if a large tile_k leaves the weight DMA exposed).
    """
    d_model = x.shape[-1]
    assert weight.shape == (d_model, d_model)
    assert bias.shape == (d_model,)

    orig_shape = x.shape
    out_dtype = x.dtype
    x2d = x.reshape(-1, d_model)
    M, K = x2d.shape
    N = d_model

    if compute_dtype is None:
        compute_dtype = x.dtype
    compute_dtype = jnp.dtype(compute_dtype)
    if x2d.dtype != compute_dtype:
        x2d = x2d.astype(compute_dtype)
    # One-time HBM-level transpose (+cast): the kernel contracts x dim 1 with
    # W^T dim 0, so Mosaic never re-layouts the weight tile inside the loop.
    wt = weight.astype(compute_dtype).T          # (K, N) = (in_features, out_features)
    b2d = bias.reshape(1, N)

    in_bytes = compute_dtype.itemsize
    out_bytes = jnp.dtype(out_dtype).itemsize
    budget = _vmem_budget_bytes()

    auto = tile_m is None and tile_n is None and tile_k is None
    if auto:
        tile_m, tile_n, tile_k, w_bufs = _select_tiles(
            M, N, K, in_bytes, out_bytes, budget)
        # Megacore (v7x has 2 TensorCores): make sure there are >= 2 parallel
        # blocks; near-neutral on single-core chips (one extra ~0.35 us step).
        if pl.cdiv(M, tile_m) * pl.cdiv(N, tile_n) < 2:
            if tile_n >= 256:
                tile_n = _round_down(tile_n // 2, 128)
            elif tile_m >= 16:
                tile_m = _round_down(tile_m // 2, 8)
    else:
        tile_m = M if tile_m is None else tile_m
        tile_n = N if tile_n is None else tile_n
        tile_k = K if tile_k is None else tile_k
        w_bufs = 2
    if weight_buffers is not None:
        w_bufs = int(weight_buffers)
    if tile_k != K and K % tile_k != 0:
        raise ValueError("tile_k must divide d_model (reduction axis cannot be padded)")

    m_blocks = pl.cdiv(M, tile_m)
    n_blocks = pl.cdiv(N, tile_n)
    k_blocks = K // tile_k

    est = _vmem_cost(tile_m, tile_n, tile_k, K, in_bytes, out_bytes, w_bufs)
    vmem_limit = int(min(max(budget, est + 8 * _MIB), 128 * _MIB))

    if k_blocks == 1:
        # Collapsed-K: 2-D grid, no accumulator, no epilogue branches.
        grid = (m_blocks, n_blocks)
        in_specs = [
            pl.BlockSpec((tile_m, K), lambda i, j: (i, 0)),
            _weight_block_spec((K, tile_n), lambda i, j: (0, j), w_bufs),
            pl.BlockSpec((1, tile_n), lambda i, j: (0, j)),
        ]
        out_specs = pl.BlockSpec((tile_m, tile_n), lambda i, j: (i, j))
        scratch_shapes = []
        kernel = functools.partial(_linear_act_kernel, activation=activation)
        dims = ("parallel", "parallel")
    else:
        grid = (m_blocks, n_blocks, k_blocks)
        in_specs = [
            pl.BlockSpec((tile_m, tile_k), lambda i, j, k: (i, k)),
            _weight_block_spec((tile_k, tile_n), lambda i, j, k: (k, j), w_bufs),
            pl.BlockSpec((1, tile_n), lambda i, j, k: (0, j)),
        ]
        out_specs = pl.BlockSpec((tile_m, tile_n), lambda i, j, k: (i, j))
        scratch_shapes = [pltpu.VMEM((tile_m, tile_n), jnp.float32)]
        kernel = functools.partial(_linear_act_acc_kernel, activation=activation)
        dims = ("parallel", "parallel", "arbitrary")

    out = pl.pallas_call(
        kernel,
        out_shape=jax.ShapeDtypeStruct((M, N), out_dtype),
        grid_spec=pltpu.PrefetchScalarGridSpec(
            num_scalar_prefetch=0,
            grid=grid,
            in_specs=in_specs,
            out_specs=out_specs,
            scratch_shapes=scratch_shapes,
        ),
        compiler_params=pltpu.CompilerParams(
            dimension_semantics=dims,
            vmem_limit_bytes=vmem_limit,
        ),
    )(x2d, wt, b2d)

    return out.reshape(orig_shape)


def _init_linear_params(key, d_model, dtype=jnp.float32):
    """Deterministic init mimicking nn.Linear's default (uniform +-1/sqrt(fan_in))."""
    kw, kb = jax.random.split(key)
    bound = 1.0 / math.sqrt(d_model)
    weight = jax.random.uniform(kw, (d_model, d_model), dtype, -bound, bound)
    bias = jax.random.uniform(kb, (d_model,), dtype, -bound, bound)
    return weight, bias


if __name__ == "__main__":
    key = jax.random.PRNGKey(0)
    k_x, k_p, k_x2, k_p2 = jax.random.split(key, 4)

    # --- small shape matching the module (batch=2, seq=8, d_model=32) ---
    batch, seq, d_model = 2, 8, 32
    x = jax.random.normal(k_x, (batch, seq, d_model), dtype=jnp.float32)
    weight, bias = _init_linear_params(k_p, d_model)
    lin_ref = x @ weight.T + bias

    # default mode preserves the f32 numerics of the PyTorch module
    y = jax.block_until_ready(com_intermediate(x, weight, bias))
    y_ref = jnp.maximum(lin_ref, 0.0)
    assert y.shape == x.shape
    assert jnp.allclose(y, y_ref, atol=1e-5, rtol=1e-5)

    # recommended bf16-MXU mode (f32 accumulation) -> looser tolerance
    y_bf16 = jax.block_until_ready(
        com_intermediate(x, weight, bias, compute_dtype=jnp.bfloat16))
    assert jnp.allclose(y_bf16, y_ref, atol=5e-2, rtol=5e-2)

    # gelu / swish activations (f32, exact)
    y_gelu = jax.block_until_ready(
        com_intermediate(x, weight, bias, activation="gelu"))
    gelu_ref = lin_ref * 0.5 * (1.0 + jax.lax.erf(lin_ref / math.sqrt(2.0)))
    assert jnp.allclose(y_gelu, gelu_ref, atol=1e-5, rtol=1e-5)

    y_swish = jax.block_until_ready(
        com_intermediate(x, weight, bias, activation="swish"))
    swish_ref = lin_ref * jax.nn.sigmoid(lin_ref)
    assert jnp.allclose(y_swish, swish_ref, atol=1e-5, rtol=1e-5)

    # --- exercise the K-tiled accumulator path + partial M tile ---
    batch2, seq2, d2 = 2, 160, 256           # M = 320 -> partial last M block
    x2 = jax.random.normal(k_x2, (batch2, seq2, d2), dtype=jnp.float32)
    w2, b2 = _init_linear_params(k_p2, d2)
    y2_ref = jnp.maximum(x2 @ w2.T + b2, 0.0)

    y2 = jax.block_until_ready(
        com_intermediate(x2, w2, b2, tile_m=128, tile_n=128, tile_k=128))
    assert y2.shape == x2.shape
    assert jnp.allclose(y2, y2_ref, atol=1e-3, rtol=1e-3)

    # --- default auto-tiling on the same shape (collapsed K, resident weight) ---
    y3 = jax.block_until_ready(com_intermediate(x2, w2, b2))
    assert jnp.allclose(y3, y2_ref, atol=1e-3, rtol=1e-3)

    print("KERNEL_OK")
</pallas_src>

<mosaic_0001>
module attributes {stable_mosaic.version = 11 : i64} {
  func.func @_linear_act_kernel(%arg0: i32, %arg1: i32, %arg2: memref<8x32xf32, #tpu.memory_space<vmem>>, %arg3: memref<32x32xf32, #tpu.memory_space<vmem>>, %arg4: memref<1x32xf32, #tpu.memory_space<vmem>>, %arg5: memref<8x32xf32, #tpu.memory_space<vmem>>) attributes {dimension_semantics = [#tpu.dimension_semantics<parallel>, #tpu.dimension_semantics<parallel>], iteration_bounds = array<i64: 2, 1>, scalar_prefetch = 0 : i64, scratch_operands = 0 : i64, tpu.core_type = #tpu.core_type<tc>, window_params = [{transform_indices = @transform_0, window_bounds = array<i64: 8, 32>}, {transform_indices = @transform_1, window_bounds = array<i64: 32, 32>}, {transform_indices = @transform_2, window_bounds = array<i64: 1, 32>}, {transform_indices = @transform_3, window_bounds = array<i64: 8, 32>}]} {
    %c0 = arith.constant 0 : index
    %c0_0 = arith.constant 0 : index
    %0 = vector.load %arg2[%c0, %c0_0] : memref<8x32xf32, #tpu.memory_space<vmem>>, vector<8x32xf32>
    %c0_1 = arith.constant 0 : index
    %c0_2 = arith.constant 0 : index
    %1 = vector.load %arg3[%c0_1, %c0_2] : memref<32x32xf32, #tpu.memory_space<vmem>>, vector<32x32xf32>
    %cst = arith.constant dense<0.000000e+00> : vector<8x32xf32>
    %2 = tpu.matmul %0, %1, %cst {dimension_numbers = #tpu.dot_dimension_numbers<[1], [0], [0], [1], [0, 0, 1, 1], [], []>} : vector<8x32xf32>, vector<32x32xf32>, vector<8x32xf32> -> vector<8x32xf32>
    %c0_3 = arith.constant 0 : index
    %c0_4 = arith.constant 0 : index
    %3 = vector.load %arg4[%c0_3, %c0_4] : memref<1x32xf32, #tpu.memory_space<vmem>>, vector<1x32xf32>
    %4 = vector.broadcast %3 : vector<1x32xf32> to vector<8x32xf32>
    %5 = arith.addf %2, %4 : vector<8x32xf32>
    %cst_5 = arith.constant 0.000000e+00 : f32
    %6 = vector.broadcast %cst_5 : f32 to vector<8x32xf32>
    %7 = arith.maximumf %5, %6 : vector<8x32xf32>
    %c0_6 = arith.constant 0 : index
    %c0_7 = arith.constant 0 : index
    %8 = vector.load %arg5[%c0_6, %c0_7] : memref<8x32xf32, #tpu.memory_space<vmem>>, vector<8x32xf32>
    tpu.vector_store %arg5[%c0_6, %c0_7], %7 {strides = array<i32>} : memref<8x32xf32, #tpu.memory_space<vmem>>, vector<8x32xf32>,
    return
  }
  func.func @transform_0(%arg0: i32, %arg1: i32) -> (i32, i32) {
    %c0_i32 = arith.constant 0 : i32
    %c0_i32_0 = arith.constant 0 : i32
    return %arg0, %c0_i32 : i32, i32
  }
  func.func @transform_1(%arg0: i32, %arg1: i32) -> (i32, i32) {
    %c0_i32 = arith.constant 0 : i32
    %c0_i32_0 = arith.constant 0 : i32
    return %c0_i32, %arg1 : i32, i32
  }
  func.func @transform_2(%arg0: i32, %arg1: i32) -> (i32, i32) {
    %c0_i32 = arith.constant 0 : i32
    %c0_i32_0 = arith.constant 0 : i32
    return %c0_i32, %arg1 : i32, i32
  }
  func.func @transform_3(%arg0: i32, %arg1: i32) -> (i32, i32) {
    %c0_i32 = arith.constant 0 : i32
    return %arg0, %arg1 : i32, i32
  }
}

</mosaic_0001>

<llo_original>
// kernel: tpu_custom_call.1
$region0: #{tpu_custom_call.1}
  #allocation0 [shape = 'u32[]', space=smem, size = 0x4, offset = 0x4, fixed_abs, tag = 'smem constant byte address 0x4 - core index']
  #allocation1 [shape = 'u32[72,128]{1,0:T(1,128)}', space=vmem, size = 0x9000, scoped, tag = 'internal scratch']
  %s0 = inlined_call_operand.hbm [shape: f32[16,32], index: 0, kind: input, shape index: {}]
  %s1 = inlined_call_operand.hbm [shape: f32[32,32], index: 1, kind: input, shape index: {}]
  %s2 = inlined_call_operand.vmem [shape: f32[1,32], index: 2, kind: input, shape index: {}]
  %s3 = inlined_call_operand.hbm [shape: f32[16,32], index: 3, kind: output, shape index: {}]
  %s4 = sld [smem:[#allocation0]]
  $region53: #{tpu_custom_call.1} parent=0
    _
  %s6 = ssub.s32 1, %s4
  %s7 = scalar_select 0, %s6, %s4
  $region1: #{tpu_custom_call.1} parent=0
    #allocation2 [shape = 'u8[8192]{0}', space=vmem, size = 0x2000, scoped, tag = 'input window, operand 0']
    #allocation3 [shape = 's32[2]{0}', space=sflag, size = 0x8, scoped, tag = 'scoped memory for tpu_custom_call.1']
    #allocation4 [shape = 's32[2]{0}', space=sflag, size = 0x8, scoped, tag = 'scoped memory for tpu_custom_call.1']
    #allocation5 [shape = 'u8[16384]{0}', space=vmem, size = 0x4000, scoped, tag = 'input window, operand 1, single buffered']
    #allocation6 [shape = 's32[1]{0}', space=sflag, size = 0x4, scoped, tag = 'scoped memory for tpu_custom_call.1']
    #allocation7 [shape = 'u8[8192]{0}', space=vmem, size = 0x2000, scoped, tag = 'output window, operand 0']
    %8 = vsyncpa [#allocation3], 0
    %s9 = scalar_lea.sflag [#allocation3], 1
    %10 = vsyncpa %s9, 0
    %11 = vsyncpa [#allocation6], 0
    %12 = vsyncpa [#allocation4], 0
    %s13 = scalar_lea.sflag [#allocation4], 1
    %14 = vsyncpa %s13, 0
    loop: start=0, step=1, limit=4
    $region2: #{tpu_custom_call.1} parent=1 // loop_pre_header
      _
    $region3: #{tpu_custom_call.1} parent=1 // loop_header
      %s16 = sphi 0, %s20
      %p17 = scmp.ge.s32.totalorder %s16, 4
      %s23 = sphi 0, %s35
      %s24 = sphi 0, %s31
      %s25 = sphi 0, %s23
      %s26 = sphi 0, %s24
      %s27 = sphi 0, %s25
      %s28 = sphi 0, %s26
      %s38 = sphi 0, %s40
      %s41 = sphi 0, %s38
      %s42 = sphi 0, %s41
      %s58 = sphi 0, %s42
      %s64 = sphi 0, %s66
      %s67 = sphi 0, %s64
      %s68 = sphi 0, %s67
      %s84 = sphi 0, %s68
      %s90 = sphi 0, %s92
      %s93 = sphi 0, %s90
      %s94 = sphi 0, %s93
      %s110 = sphi 0, %s94
      %s118 = sphi 0, %s120
      %s121 = sphi 0, %s118
      %s122 = sphi 0, %s121
      %s138 = sphi 0, %s122
    $region4: #{tpu_custom_call.1} parent=1 // loop_header_branch
      %19 = sbr.rel (%p17) target = $region8
    $region5: #{tpu_custom_call.1} parent=1 // loop_body
      %s21 = ssub.s32 %s16, 1
      %s22 = ssub.s32 %s16, 2
      %s29 = sadd.s32 1, %s24
      %p30 = scmp.ge.s32.totalorder %s29, 1
      %s31 = scalar_select %p30, 0, %s29
      %s32 = sadd.s32 1, %s23
      %s33 = scalar_select %p30, %s32, %s23
      %p34 = scmp.ge.s32.totalorder %s33, 2
      %s35 = scalar_select %p34, 0, %s33
      %s36 = ssub.s32 %s23, %s35
      %p37 = scmp.eq.s32.totalorder %s36, 0
      %s39 = sadd.s32 %s38, 1
      %s40 = scalar_select %p37, %s38, %s39
      %p43 = pneg %p37
      %p44 = scmp.eq.s32.totalorder %s16, 1
      %p45 = por %p43, %p44
      %p46 = scmp.ne.s32.totalorder %s38, %s41
      %p47 = scmp.eq.s32.totalorder %s16, 0
      %p48 = por %p46, %p47
      %p49 = scmp.ne.s32.totalorder %s38, %s41
      %p50 = scmp.eq.s32.totalorder %s21, 1
      %p51 = por %p49, %p50
      %p52 = scmp.ne.s32.totalorder %s41, %s42
      %p53 = scmp.eq.s32.totalorder %s21, 0
      %p54 = por %p52, %p53
      %p55 = scmp.ne.s32.totalorder %s41, %s42
      %p56 = scmp.eq.s32.totalorder %s22, 1
      %p57 = por %p55, %p56
      %p59 = scmp.ne.s32.totalorder %s42, %s58
      %p60 = scmp.eq.s32.totalorder %s22, 0
      %p61 = por %p59, %p60
      %s62 = ssub.s32 %s24, %s31
      %p63 = scmp.eq.s32.totalorder %s62, 0
      %s65 = sadd.s32 %s64, 1
      %s66 = scalar_select %p63, %s64, %s65
      %p69 = pneg %p63
      %p70 = scmp.eq.s32.totalorder %s16, 1
      %p71 = por %p69, %p70
      %p72 = scmp.ne.s32.totalorder %s64, %s67
      %p73 = scmp.eq.s32.totalorder %s16, 0
      %p74 = por %p72, %p73
      %p75 = scmp.ne.s32.totalorder %s64, %s67
      %p76 = scmp.eq.s32.totalorder %s21, 1
      %p77 = por %p75, %p76
      %p78 = scmp.ne.s32.totalorder %s67, %s68
      %p79 = scmp.eq.s32.totalorder %s21, 0
      %p80 = por %p78, %p79
      %p81 = scmp.ne.s32.totalorder %s67, %s68
      %p82 = scmp.eq.s32.totalorder %s22, 1
      %p83 = por %p81, %p82
      %p85 = scmp.ne.s32.totalorder %s68, %s84
      %p86 = scmp.eq.s32.totalorder %s22, 0
      %p87 = por %p85, %p86
      %s88 = ssub.s32 %s24, %s31
      %p89 = scmp.eq.s32.totalorder %s88, 0
      %s91 = sadd.s32 %s90, 1
      %s92 = scalar_select %p89, %s90, %s91
      %p95 = pneg %p89
      %p96 = scmp.eq.s32.totalorder %s16, 1
      %p97 = por %p95, %p96
      %p98 = scmp.ne.s32.totalorder %s90, %s93
      %p99 = scmp.eq.s32.totalorder %s16, 0
      %p100 = por %p98, %p99
      %p101 = scmp.ne.s32.totalorder %s90, %s93
      %p102 = scmp.eq.s32.totalorder %s21, 1
      %p103 = por %p101, %p102
      %p104 = scmp.ne.s32.totalorder %s93, %s94
      %p105 = scmp.eq.s32.totalorder %s21, 0
      %p106 = por %p104, %p105
      %p107 = scmp.ne.s32.totalorder %s93, %s94
      %p108 = scmp.eq.s32.totalorder %s22, 1
      %p109 = por %p107, %p108
      %p111 = scmp.ne.s32.totalorder %s94, %s110
      %p112 = scmp.eq.s32.totalorder %s22, 0
      %p113 = por %p111, %p112
      %s114 = ssub.s32 %s23, %s35
      %s115 = ssub.s32 %s24, %s31
      %s116 = sor.u32 %s114, %s115
      %p117 = scmp.eq.s32.totalorder %s116, 0
      %s119 = sadd.s32 %s118, 1
      %s120 = scalar_select %p117, %s118, %s119
      %p123 = pneg %p117
      %p124 = scmp.eq.s32.totalorder %s16, 1
      %p125 = por %p123, %p124
      %p126 = scmp.ne.s32.totalorder %s118, %s121
      %p127 = scmp.eq.s32.totalorder %s16, 0
      %p128 = por %p126, %p127
      %p129 = scmp.ne.s32.totalorder %s118, %s121
      %p130 = scmp.eq.s32.totalorder %s21, 1
      %p131 = por %p129, %p130
      %p132 = scmp.ne.s32.totalorder %s121, %s122
      %p133 = scmp.eq.s32.totalorder %s21, 0
      %p134 = por %p132, %p133
      %p135 = scmp.ne.s32.totalorder %s121, %s122
      %p136 = scmp.eq.s32.totalorder %s22, 1
      %p137 = por %p135, %p136
      %p139 = scmp.ne.s32.totalorder %s122, %s138
      %p140 = scmp.eq.s32.totalorder %s22, 0
      %p141 = por %p139, %p140
      %p142 = scmp.le.s32.totalorder 1, %s16
      %p143 = scmp.lt.s32.totalorder %s16, 3
      %p144 = pnand %p142, %p143
      %p145 = pneg %p144
      // Predicated region
      $region9: #{tpu_custom_call.1} parent=5 // pred_check
        _
      $region10: #{tpu_custom_call.1} parent=5 // pred_check_branch
        %147 = sbr.rel (%p144) target = $region12
      $region11: #{tpu_custom_call.1} parent=5 // pred_region
        %s148 = ssub.s32 %s16, 1
        // Predicated region
        $region13: #{tpu_custom_call.1} parent=11 // pred_check
          %p149 = pneg %p80
        $region14: #{tpu_custom_call.1} parent=11 // pred_check_branch
          %151 = sbr.rel (%p149) target = $region16
        $region15: #{tpu_custom_call.1} parent=11 // pred_region
          %153 = vsyncadd [#allocation6], 0
          %s154 = smul.addr %s26, 8
          %s155 = scalar_lea.hbm %s1, %s154
          %s156 = sshll.u32 %s155, 4
          %s157 = int_to_ptr.hbm [resolvable:$true] %s156
          %s158 = sshll.u32 [#allocation5], 4
          %s159 = int_to_ptr.vmem [resolvable:$true] %s158
          %164 = dma.hbm_to_vmem [thread:$0]  %s157, 512, %s159, [#allocation6], 128, 128, 8
        $region16: #{tpu_custom_call.1} parent=11 // pred_fallthru
          _
        // Predicated region
        $region17: #{tpu_custom_call.1} parent=11 // pred_check
          %p165 = pneg %p106
        $region18: #{tpu_custom_call.1} parent=11 // pred_check_branch
          %167 = sbr.rel (%p165) target = $region20
        $region19: #{tpu_custom_call.1} parent=11 // pred_region
          %p168 = scmp.lt.s32.totalorder %s26, 0
          %s169 = scalar_select %p168, %s26, 0
          %s170 = scalar_lea.vmem %s2, %s169
        $region20: #{tpu_custom_call.1} parent=11 // pred_fallthru
          _
      $region12: #{tpu_custom_call.1} parent=5 // pred_fallthru
        _
      %p171 = scmp.lt.s32.totalorder %s16, 2
      // Predicated region
      $region21: #{tpu_custom_call.1} parent=5 // pred_check
        %p172 = pneg %p171
      $region22: #{tpu_custom_call.1} parent=5 // pred_check_branch
        %174 = sbr.rel (%p172) target = $region24
      $region23: #{tpu_custom_call.1} parent=5 // pred_region
        // Predicated region
        $region25: #{tpu_custom_call.1} parent=23 // pred_check
          %p175 = pneg %p48
        $region26: #{tpu_custom_call.1} parent=23 // pred_check_branch
          %177 = sbr.rel (%p175) target = $region28
        $region27: #{tpu_custom_call.1} parent=23 // pred_region
          %s178 = sand.u32 %s38, 1
          %s179 = scalar_lea.sflag [#allocation3], %s178
          %s180 = sand.u32 %s38, 1
          %s181 = smul.addr %s180, 8
          %s182 = scalar_lea.vmem [#allocation2], %s181
          %184 = vsyncadd %s179, 0
          %s185 = smul.addr %s23, 8
          %s186 = scalar_lea.hbm %s0, %s185
          %s188 = sshll.u32 %s186, 4
          %s189 = int_to_ptr.hbm [resolvable:$true] %s188
          %s190 = sshll.u32 %s182, 4
          %s191 = int_to_ptr.vmem [resolvable:$true] %s190
          %193 = dma.hbm_to_vmem [thread:$0]  %s189, 128, %s191, %s179
        $region28: #{tpu_custom_call.1} parent=23 // pred_fallthru
          _
      $region24: #{tpu_custom_call.1} parent=5 // pred_fallthru
        _
      %p194 = scmp.le.s32.totalorder 1, %s16
      %p195 = scmp.lt.s32.totalorder %s16, 3
      %p196 = pnand %p194, %p195
      %p197 = pneg %p196
      // Predicated region
      $region29: #{tpu_custom_call.1} parent=5 // pred_check
        _
      $region30: #{tpu_custom_call.1} parent=5 // pred_check_branch
        %199 = sbr.rel (%p196) target = $region32
      $region31: #{tpu_custom_call.1} parent=5 // pred_region
        %s200 = ssub.s32 %s16, 1
        %s201 = sand.u32 %s41, 1
        %s202 = scalar_lea.sflag [#allocation3], %s201
        %s203 = sand.u32 %s41, 1
        %s204 = smul.addr %s203, 8
        %s205 = scalar_lea.vmem [#allocation2], %s204
        // Predicated region
        $region33: #{tpu_custom_call.1} parent=31 // pred_check
          %p206 = pneg %p54
        $region34: #{tpu_custom_call.1} parent=31 // pred_check_branch
          %208 = sbr.rel (%p206) target = $region36
        $region35: #{tpu_custom_call.1} parent=31 // pred_region
          %210 = dma.done %s202, 128
        $region36: #{tpu_custom_call.1} parent=31 // pred_fallthru
          _
        // Predicated region
        $region37: #{tpu_custom_call.1} parent=31 // pred_check
          %p211 = pneg %p80
        $region38: #{tpu_custom_call.1} parent=31 // pred_check_branch
          %213 = sbr.rel (%p211) target = $region40
        $region39: #{tpu_custom_call.1} parent=31 // pred_region
          %215 = dma.done [#allocation6], 512
        $region40: #{tpu_custom_call.1} parent=31 // pred_fallthru
          _
        %s216 = sand.u32 %s41, 1
        %s217 = scalar_lea.sflag [#allocation3], %s216
        %s218 = sand.u32 %s41, 1
        %s219 = smul.addr %s218, 8
        %s220 = scalar_lea.vmem [#allocation2], %s219
        %p221 = pneg %p54
        %p222 = pneg %p51
        %p223 = pneg %p80
        %p224 = pneg %p77
        %p225 = scmp.lt.s32.totalorder %s26, 0
        %s226 = scalar_select %p225, %s26, 0
        %s227 = scalar_lea.vmem %s2, %s226
        %p228 = pneg %p106
        %p229 = pneg %p103
        %p230 = pneg %p134
        %p231 = pneg %p131
        %s232 = sand.u32 %s121, 1
        %s233 = scalar_lea.sflag [#allocation4], %s232
        %s234 = sand.u32 %s121, 1
        %s235 = smul.addr %s234, 8
        %s236 = scalar_lea.vmem [#allocation7], %s235
        %p237 = scmp.lt.s32.totalorder %s26, 0
        %s238 = scalar_select %p237, %s26, 0
        %s239 = scalar_lea.vmem %s2, %s238
        %v240 = vld [vmem:[%s205] sm:$0xff]
        %v241 = vld [vmem:[#allocation5] sm:$0xff]
        %v242 = vld [vmem:[#allocation5 + $0x8] sm:$0xff]
        %v243 = vld [vmem:[#allocation5 + $0x10] sm:$0xff]
        %v244 = vld [vmem:[#allocation5 + $0x18] sm:$0xff]
        %v245 = vld [vmem:[%s239] sm:$0x1]
        %v247 = vperm.slane %v245, 0
        %vm249 = vcmask 261120
        %v251 = vsel %vm249, %v240, 0
        %253 = vmatpush.msra.mxu0 0.0
        %254 = vmatpush.msra.mxu0 0.0
        %255 = vmatpush.msra.mxu0 0.0
        %256 = vmatpush.msra.mxu0 0.0
        %257 = vmatpush.msra.mxu0 0.0
        %258 = vmatpush.msra.mxu0 0.0
        %259 = vmatpush.msra.mxu0 0.0
        %260 = vmatpush.msra.mxu0 0.0
        %261 = vmatpush.msra.mxu0 0.0
        %262 = vmatpush.msra.mxu0 0.0
        %263 = vmatpush.msra.mxu0 0.0
        %264 = vmatpush.msra.mxu0 0.0
        %265 = vmatpush.msra.mxu0 %v244
        %266 = vmatpush.msra.mxu0 %v243
        %267 = vmatpush.msra.mxu0 %v242
        %268 = vmatpush.msra.mxu0 %v241
        %269 = vmatmul.f32.gmra.mxu0 %v251
        %v270 = vpop.f32.mrf.mxu0
        %v271 = vadd.f32 %v247, %v270
        %272 = vdwg.mxu0
        %v273 = vmax.f32 %v271, 0.0
        %274 = vst.msk [vmem:[%s236] sm:$0xff] %vm249, %v273
        %s275 = sand.u32 %s121, 1
        %s276 = scalar_lea.sflag [#allocation4], %s275
        %s277 = sand.u32 %s121, 1
        %s278 = smul.addr %s277, 8
        %s279 = scalar_lea.vmem [#allocation7], %s278
        // Predicated region
        $region41: #{tpu_custom_call.1} parent=31 // pred_check
          %p280 = pneg %p131
        $region42: #{tpu_custom_call.1} parent=31 // pred_check_branch
          %282 = sbr.rel (%p280) target = $region44
        $region43: #{tpu_custom_call.1} parent=31 // pred_region
          %284 = vsyncadd %s276, 0
          %s285 = sadd.s32 %s26, %s25
          %s286 = smul.addr %s285, 8
          %s287 = scalar_lea.hbm %s3, %s286
          %s289 = sshll.u32 %s279, 4
          %s290 = int_to_ptr.vmem [resolvable:$true] %s289
          %s291 = sshll.u32 %s287, 4
          %s292 = int_to_ptr.hbm [resolvable:$true] %s291
          %294 = dma.vmem_to_hbm [thread:$0]  %s290, 128, %s292, %s276
        $region44: #{tpu_custom_call.1} parent=31 // pred_fallthru
          _
      $region32: #{tpu_custom_call.1} parent=5 // pred_fallthru
        _
      %p295 = scmp.le.s32.totalorder 2, %s16
      // Predicated region
      $region45: #{tpu_custom_call.1} parent=5 // pred_check
        %p296 = pneg %p295
      $region46: #{tpu_custom_call.1} parent=5 // pred_check_branch
        %298 = sbr.rel (%p296) target = $region48
      $region47: #{tpu_custom_call.1} parent=5 // pred_region
        %s299 = ssub.s32 %s16, 2
        // Predicated region
        $region49: #{tpu_custom_call.1} parent=47 // pred_check
          %p300 = pneg %p137
        $region50: #{tpu_custom_call.1} parent=47 // pred_check_branch
          %302 = sbr.rel (%p300) target = $region52
        $region51: #{tpu_custom_call.1} parent=47 // pred_region
          %s303 = sand.u32 %s122, 1
          %s304 = scalar_lea.sflag [#allocation4], %s303
          %s305 = sand.u32 %s122, 1
          %s306 = smul.addr %s305, 8
          %s307 = scalar_lea.vmem [#allocation7], %s306
          %309 = dma.done %s304, 128
        $region52: #{tpu_custom_call.1} parent=47 // pred_fallthru
          _
      $region48: #{tpu_custom_call.1} parent=5 // pred_fallthru
        _
    $region6: #{tpu_custom_call.1} parent=1 // loop_footer
      %s20 = sadd.s32 1, %s16
    $region7: #{tpu_custom_call.1} parent=1 // loop_footer_branch
      %15 = sbr.rel target = $region3
    $region8: #{tpu_custom_call.1} parent=1 // loop_exit
      _
    %310 = vsyncpa [#allocation3], 1
    %s311 = scalar_lea.sflag [#allocation3], 1
    %312 = vsyncpa %s311, 1
    %313 = vsyncpa [#allocation6], 1
    %314 = vsyncpa [#allocation4], 1
    %s315 = scalar_lea.sflag [#allocation4], 1
    %316 = vsyncpa %s315, 1

</llo_original>
